<compile_context>
chip_gen: v5e
topology: v5e:2x2
jax: 0.10.0
libtpu: 0.0.40
codegen_flags: <defaults>
</compile_context>

<pallas_src>
import functools
import math

import jax
import jax.numpy as jnp
from jax.experimental import pallas as pl
from jax.experimental.pallas import tpu as pltpu

LANE = 128
SUBLANE = 8


def _bikld_kernel(pred_ref, label_ref, kd_acc_ref, cnt_acc_ref, *,
                  num_tiles, steps_per_split, tile_rows, chunk, rows_in_last,
                  ignore_index, log, smooth, epsilon):
    c = pl.program_id(0)                  # core-split axis ("parallel")
    i = pl.program_id(1)                  # row-tile step within split ("arbitrary")
    tile_idx = c * steps_per_split + i    # unclamped logical tile index

    @pl.when(i == 0)
    def _init():
        kd_acc_ref[...] = jnp.zeros_like(kd_acc_ref)
        cnt_acc_ref[...] = jnp.zeros_like(cnt_acc_ref)

    def accumulate(start, row_limit=None):
        """Fold one (chunk, LANE) slice of the current block into the accs."""
        p = pred_ref[pl.ds(start, chunk), :].astype(jnp.float32)
        t = label_ref[pl.ds(start, chunk), :].astype(jnp.float32)

        # valid mask on the *raw* label (before log/smooth), as in the PyTorch
        # forward.  Only the single partial trailing chunk (if any) also needs
        # a row mask; full chunks carry no per-element index math.
        valid = (t >= 0.0) & (t != float(ignore_index))
        if row_limit is not None:
            rid = jax.lax.broadcasted_iota(jnp.int32, (chunk, LANE), 0)
            valid &= rid < row_limit

        if log:
            p = jnp.log(jnp.maximum(p, 1e-6))
            t = jnp.log(jnp.maximum(t, 1e-6))
        if smooth:
            t = (1.0 - epsilon) * t + epsilon * p

        # sigmoid(p) = 0.5*tanh(0.5*p) + 0.5 : one EUP op instead of exp+recip.
        sig = 0.5 * jnp.tanh(0.5 * p) + 0.5
        # |xlogy(t, t) - t*sigmoid(p)| == |t * (log(t) - sigmoid(p))|, 0 at t==0.
        kd = jnp.abs(t * (jnp.log(t) - sig))
        keep = valid & (t != 0.0)

        # select (not multiply): NaN/garbage in masked slots cannot poison sums.
        kd_acc_ref[0] = kd_acc_ref[0] + jnp.where(keep, kd, 0.0)
        cnt_acc_ref[0] = cnt_acc_ref[0] + jnp.where(valid, 1.0, 0.0)

    nchunks = tile_rows // chunk

    def full_tile():
        def body(s, carry):
            accumulate(pl.multiple_of(s * chunk, chunk))
            return carry
        unroll = 2 if (nchunks >= 2 and nchunks % 2 == 0) else 1
        jax.lax.fori_loop(0, nchunks, body, 0, unroll=unroll)

    has_partial = rows_in_last != tile_rows   # static Python bool
    if has_partial:
        last = num_tiles - 1

        @pl.when(tile_idx < last)
        def _full():
            full_tile()

        @pl.when(tile_idx == last)
        def _partial():
            fc = rows_in_last // chunk
            if fc > 0:
                def body(s, carry):
                    accumulate(pl.multiple_of(s * chunk, chunk))
                    return carry
                unroll = 2 if (fc >= 2 and fc % 2 == 0) else 1
                jax.lax.fori_loop(0, fc, body, 0, unroll=unroll)
            rem = rows_in_last - fc * chunk
            if rem:
                accumulate(fc * chunk, row_limit=rem)
    else:
        @pl.when(tile_idx < num_tiles)
        def _full():
            full_tile()


def bi_kld_loss(pred, label, *, ignore_index=255, loss_weight=1.0,
                smooth=False, epsilon=0.1, log=False, T=1,
                tile_rows=4096, num_core_splits=2):
    """Pallas implementation of BiKLDLOSS.forward. Returns a scalar (f32)."""
    assert pred.shape == label.shape
    n = pred.size

    pred_flat = pred.reshape(-1)
    label_flat = label.reshape(-1)

    rows = -(-n // LANE)
    total = rows * LANE
    if total != n:
        # Ragged (n % 128 != 0) fallback: pad up to a lane multiple.  The label
        # is padded with ignore_index so padded slots fail the valid mask and
        # the hot loop stays free of per-element index masking.
        # TODO(synk): ragged shapes still pay one full-array pad copy; a tiny
        # separate sub-128 tail kernel would remove it.
        pad = total - n
        pred_flat = jnp.pad(pred_flat, (0, pad))
        label_flat = jnp.pad(label_flat, (0, pad),
                             constant_values=float(ignore_index))
    pred2d = pred_flat.reshape(rows, LANE)
    label2d = label_flat.reshape(rows, LANE)

    # Tile sizing: big lane-dense row tiles (default (4096,128) f32 = 2 MiB per
    # input per buffer -> 8 MiB double-buffered, inside default scoped VMEM on
    # all generations).  Shrink to the full row extent when the array is small.
    tile_rows = max(SUBLANE, (int(tile_rows) // SUBLANE) * SUBLANE)
    if tile_rows >= rows:
        tile_rows = rows                       # single full-extent block
    chunk = math.gcd(tile_rows, 8 * SUBLANE)   # rows per inner compute step

    num_tiles = -(-rows // tile_rows)
    splits = max(1, min(num_core_splits, num_tiles))
    steps = -(-num_tiles // splits)
    rows_in_last = rows - (num_tiles - 1) * tile_rows

    def in_map(c, i):
        # Clamp so redundant trailing steps of the core split never address an
        # out-of-range block; the kernel skips their work via a scalar pl.when.
        return (jnp.minimum(c * steps + i, num_tiles - 1), 0)

    kernel = functools.partial(
        _bikld_kernel, num_tiles=num_tiles, steps_per_split=steps,
        tile_rows=tile_rows, chunk=chunk, rows_in_last=rows_in_last,
        ignore_index=ignore_index, log=log, smooth=smooth, epsilon=epsilon)

    kd_acc, cnt_acc = pl.pallas_call(
        kernel,
        out_shape=(jax.ShapeDtypeStruct((splits, chunk, LANE), jnp.float32),
                   jax.ShapeDtypeStruct((splits, chunk, LANE), jnp.float32)),
        grid_spec=pltpu.PrefetchScalarGridSpec(
            num_scalar_prefetch=0,
            grid=(splits, steps),
            in_specs=[pl.BlockSpec((tile_rows, LANE), in_map),
                      pl.BlockSpec((tile_rows, LANE), in_map)],
            out_specs=[pl.BlockSpec((1, chunk, LANE), lambda c, i: (c, 0, 0)),
                       pl.BlockSpec((1, chunk, LANE), lambda c, i: (c, 0, 0))]),
        # "parallel" lets Mosaic shard the split axis across TensorCores where
        # the chip has more than one (v7x); harmless on single-TC v5e/v6e.
        compiler_params=pltpu.CompilerParams(
            dimension_semantics=("parallel", "arbitrary")),
    )(pred2d, label2d)

    # Tiny final reduction of the per-split (chunk,128) partials.
    loss_sum = jnp.sum(kd_acc)
    nvalid = jnp.sum(cnt_acc)
    return loss_weight * loss_sum / jnp.maximum(nvalid, 1.0) * float(T * T)


def _reference(pred, label, *, ignore_index=255, loss_weight=1.0,
               smooth=False, epsilon=0.1, log=False, T=1):
    """Pure-JAX reference mirroring the PyTorch forward."""
    p = pred.astype(jnp.float32)
    t = label.astype(jnp.float32)
    valid = (t >= 0.0) & (t != float(ignore_index))
    if log:
        p = jnp.log(jnp.maximum(p, 1e-6))
        t = jnp.log(jnp.maximum(t, 1e-6))
    if smooth:
        t = (1.0 - epsilon) * t + epsilon * p
    xlogy_tt = jnp.where(t == 0.0, 0.0, t * jnp.log(t))
    kd = jnp.abs(xlogy_tt - t * jax.nn.sigmoid(p))
    kd = jnp.where(valid, kd, 0.0)
    nvalid = jnp.sum(valid.astype(jnp.float32))
    return loss_weight * jnp.sum(kd) / jnp.maximum(nvalid, 1.0) * float(T * T)


def _make_inputs(key, shape, ignore_index=255):
    k_pred, k_lab, k_mask = jax.random.split(key, 3)
    pred = jax.random.normal(k_pred, shape, dtype=jnp.float32)
    # Non-negative "soft" labels, a few exact zeros, some ignore_index pixels.
    label = jnp.abs(jax.random.normal(k_lab, shape, dtype=jnp.float32)) * 5.0
    label = label.at[..., :2].set(0.0)
    ignore_hits = jax.random.bernoulli(k_mask, 0.1, shape)
    label = jnp.where(ignore_hits, float(ignore_index), label)
    return pred, label


if __name__ == "__main__":
    key = jax.random.PRNGKey(0)
    keys = jax.random.split(key, 4)
    TOL = dict(rtol=2e-5, atol=2e-5)

    # 1) Lane-aligned NCHW input, single full-extent block (default tiling).
    pred, label = _make_inputs(keys[0], (2, 4, 16, 16))
    out = jax.block_until_ready(bi_kld_loss(pred, label))
    ref = _reference(pred, label)
    assert jnp.allclose(out, ref, **TOL), (out, ref)

    # 2) Multi-tile + 2-way core split with an uneven tile count (exercises the
    #    clamped/skipped trailing step) plus loss_weight / T plumbing.
    pred2, label2 = _make_inputs(keys[1], (2, 4, 16, 24))
    out2 = jax.block_until_ready(
        bi_kld_loss(pred2, label2, loss_weight=0.5, T=2, tile_rows=8))
    ref2 = _reference(pred2, label2, loss_weight=0.5, T=2)
    assert jnp.allclose(out2, ref2, **TOL), (out2, ref2)

    # 3) Ragged element count (not a multiple of 128) -> ignore_index pad path.
    pred3, label3 = _make_inputs(keys[2], (3, 5, 7, 9))
    out3 = jax.block_until_ready(bi_kld_loss(pred3, label3))
    ref3 = _reference(pred3, label3)
    assert jnp.allclose(out3, ref3, **TOL), (out3, ref3)

    # 4) Partial trailing tile (rows % tile_rows != 0): masked remainder chunk
    #    reading garbage block rows, plus a skipped duplicate step on split 1.
    pred4, label4 = _make_inputs(keys[3], (2, 4, 17, 128))
    out4 = jax.block_until_ready(bi_kld_loss(pred4, label4, tile_rows=64))
    ref4 = _reference(pred4, label4)
    assert jnp.allclose(out4, ref4, **TOL), (out4, ref4)

    print("KERNEL_OK")
</pallas_src>

<mosaic_0001>
module attributes {stable_mosaic.version = 11 : i64} {
  func.func @_bikld_kernel(%arg0: i32, %arg1: i32, %arg2: memref<16x128xf32, #tpu.memory_space<vmem>>, %arg3: memref<16x128xf32, #tpu.memory_space<vmem>>, %arg4: memref<1x16x128xf32, #tpu.memory_space<vmem>>, %arg5: memref<1x16x128xf32, #tpu.memory_space<vmem>>) attributes {dimension_semantics = [#tpu.dimension_semantics<parallel>, #tpu.dimension_semantics<arbitrary>], iteration_bounds = array<i64: 1, 1>, scalar_prefetch = 0 : i64, scratch_operands = 0 : i64, tpu.core_type = #tpu.core_type<tc>, window_params = [{transform_indices = @transform_0, window_bounds = array<i64: 16, 128>}, {transform_indices = @transform_1, window_bounds = array<i64: 16, 128>}, {transform_indices = @transform_2, window_bounds = array<i64: 1, 16, 128>}, {transform_indices = @transform_3, window_bounds = array<i64: 1, 16, 128>}]} {
    %c1_i32 = arith.constant 1 : i32
    %0 = arith.muli %arg0, %c1_i32 : i32
    %1 = arith.addi %0, %arg1 : i32
    %c0_i32 = arith.constant 0 : i32
    %2 = arith.cmpi eq, %arg1, %c0_i32 : i32
    %3 = arith.extui %2 : i1 to i32
    %c0_i32_0 = arith.constant 0 : i32
    %4 = arith.cmpi ne, %3, %c0_i32_0 : i32
    scf.if %4 {
      %cst = arith.constant 0.000000e+00 : f32
      %8 = vector.broadcast %cst : f32 to vector<1x16x128xf32>
      %c0 = arith.constant 0 : index
      %c0_3 = arith.constant 0 : index
      %c0_4 = arith.constant 0 : index
      %9 = vector.load %arg4[%c0, %c0_3, %c0_4] : memref<1x16x128xf32, #tpu.memory_space<vmem>>, vector<1x16x128xf32>
      tpu.vector_store %arg4[%c0, %c0_3, %c0_4], %8 {strides = array<i32>} : memref<1x16x128xf32, #tpu.memory_space<vmem>>, vector<1x16x128xf32>,
      %cst_5 = arith.constant 0.000000e+00 : f32
      %10 = vector.broadcast %cst_5 : f32 to vector<1x16x128xf32>
      %c0_6 = arith.constant 0 : index
      %c0_7 = arith.constant 0 : index
      %c0_8 = arith.constant 0 : index
      %11 = vector.load %arg5[%c0_6, %c0_7, %c0_8] : memref<1x16x128xf32, #tpu.memory_space<vmem>>, vector<1x16x128xf32>
      tpu.vector_store %arg5[%c0_6, %c0_7, %c0_8], %10 {strides = array<i32>} : memref<1x16x128xf32, #tpu.memory_space<vmem>>, vector<1x16x128xf32>,
    } else {
    }
    %c1_i32_1 = arith.constant 1 : i32
    %5 = arith.cmpi slt, %1, %c1_i32_1 : i32
    %6 = arith.extui %5 : i1 to i32
    %c0_i32_2 = arith.constant 0 : i32
    %7 = arith.cmpi ne, %6, %c0_i32_2 : i32
    scf.if %7 {
      %c0_i32_3 = arith.constant 0 : i32
      %c16_i32 = arith.constant 16 : i32
      %8 = arith.muli %c0_i32_3, %c16_i32 : i32
      %9 = tpu.assume_multiple %8, 16 : i32
      %10 = arith.index_cast %9 : i32 to index
      %c0 = arith.constant 0 : index
      %11 = vector.load %arg2[%10, %c0] : memref<16x128xf32, #tpu.memory_space<vmem>>, vector<16x128xf32>
      %12 = arith.index_cast %9 : i32 to index
      %c0_4 = arith.constant 0 : index
      %13 = vector.load %arg3[%12, %c0_4] : memref<16x128xf32, #tpu.memory_space<vmem>>, vector<16x128xf32>
      %cst = arith.constant 0.000000e+00 : f32
      %14 = vector.broadcast %cst : f32 to vector<16x128xf32>
      %15 = arith.cmpf oge, %13, %14 : vector<16x128xf32>
      %cst_5 = arith.constant 2.550000e+02 : f32
      %16 = vector.broadcast %cst_5 : f32 to vector<16x128xf32>
      %17 = arith.cmpf one, %13, %16 : vector<16x128xf32>
      %18 = arith.andi %15, %17 : vector<16x128xi1>
      %cst_6 = arith.constant 5.000000e-01 : f32
      %19 = vector.broadcast %cst_6 : f32 to vector<16x128xf32>
      %20 = arith.mulf %19, %11 : vector<16x128xf32>
      %21 = math.tanh %20 : vector<16x128xf32>
      %cst_7 = arith.constant 5.000000e-01 : f32
      %22 = vector.broadcast %cst_7 : f32 to vector<16x128xf32>
      %23 = arith.mulf %22, %21 : vector<16x128xf32>
      %cst_8 = arith.constant 5.000000e-01 : f32
      %24 = vector.broadcast %cst_8 : f32 to vector<16x128xf32>
      %25 = arith.addf %23, %24 : vector<16x128xf32>
      %26 = math.log %13 : vector<16x128xf32>
      %27 = arith.subf %26, %25 : vector<16x128xf32>
      %28 = arith.mulf %13, %27 : vector<16x128xf32>
      %29 = math.absf %28 : vector<16x128xf32>
      %cst_9 = arith.constant 0.000000e+00 : f32
      %30 = vector.broadcast %cst_9 : f32 to vector<16x128xf32>
      %31 = arith.cmpf one, %13, %30 : vector<16x128xf32>
      %32 = arith.andi %18, %31 : vector<16x128xi1>
      %c0_10 = arith.constant 0 : index
      %c0_11 = arith.constant 0 : index
      %c0_12 = arith.constant 0 : index
      %33 = vector.load %arg4[%c0_10, %c0_11, %c0_12] : memref<1x16x128xf32, #tpu.memory_space<vmem>>, vector<1x16x128xf32>
      %34 = vector.shape_cast %33 : vector<1x16x128xf32> to vector<16x128xf32>
      %cst_13 = arith.constant 0.000000e+00 : f32
      %35 = vector.broadcast %cst_13 : f32 to vector<16x128xf32>
      %36 = arith.select %32, %29, %35 : vector<16x128xi1>, vector<16x128xf32>
      %37 = arith.addf %34, %36 : vector<16x128xf32>
      %c0_14 = arith.constant 0 : index
      %c0_15 = arith.constant 0 : index
      %c0_16 = arith.constant 0 : index
      %38 = vector.load %arg4[%c0_14, %c0_15, %c0_16] : memref<1x16x128xf32, #tpu.memory_space<vmem>>, vector<1x16x128xf32>
      %39 = vector.shape_cast %38 : vector<1x16x128xf32> to vector<16x128xf32>
      %40 = vector.shape_cast %37 : vector<16x128xf32> to vector<1x16x128xf32>
      tpu.vector_store %arg4[%c0_14, %c0_15, %c0_16], %40 {strides = array<i32>} : memref<1x16x128xf32, #tpu.memory_space<vmem>>, vector<1x16x128xf32>,
      %c0_17 = arith.constant 0 : index
      %c0_18 = arith.constant 0 : index
      %c0_19 = arith.constant 0 : index
      %41 = vector.load %arg5[%c0_17, %c0_18, %c0_19] : memref<1x16x128xf32, #tpu.memory_space<vmem>>, vector<1x16x128xf32>
      %42 = vector.shape_cast %41 : vector<1x16x128xf32> to vector<16x128xf32>
      %cst_20 = arith.constant 1.000000e+00 : f32
      %cst_21 = arith.constant 0.000000e+00 : f32
      %43 = vector.broadcast %cst_20 : f32 to vector<16x128xf32>
      %44 = vector.broadcast %cst_21 : f32 to vector<16x128xf32>
      %45 = arith.select %18, %43, %44 : vector<16x128xi1>, vector<16x128xf32>
      %46 = arith.addf %42, %45 : vector<16x128xf32>
      %c0_22 = arith.constant 0 : index
      %c0_23 = arith.constant 0 : index
      %c0_24 = arith.constant 0 : index
      %47 = vector.load %arg5[%c0_22, %c0_23, %c0_24] : memref<1x16x128xf32, #tpu.memory_space<vmem>>, vector<1x16x128xf32>
      %48 = vector.shape_cast %47 : vector<1x16x128xf32> to vector<16x128xf32>
      %49 = vector.shape_cast %46 : vector<16x128xf32> to vector<1x16x128xf32>
      tpu.vector_store %arg5[%c0_22, %c0_23, %c0_24], %49 {strides = array<i32>} : memref<1x16x128xf32, #tpu.memory_space<vmem>>, vector<1x16x128xf32>,
      %c1_i32_25 = arith.constant 1 : i32
    } else {
    }
    return
  }
  func.func @transform_0(%arg0: i32, %arg1: i32) -> (i32, i32) {
    %c1_i32 = arith.constant 1 : i32
    %0 = arith.muli %arg0, %c1_i32 : i32
    %1 = arith.addi %0, %arg1 : i32
    %c0_i32 = arith.constant 0 : i32
    %2 = arith.minsi %1, %c0_i32 : i32
    %c0_i32_0 = arith.constant 0 : i32
    %c0_i32_1 = arith.constant 0 : i32
    return %2, %c0_i32_0 : i32, i32
  }
  func.func @transform_1(%arg0: i32, %arg1: i32) -> (i32, i32) {
    %c1_i32 = arith.constant 1 : i32
    %0 = arith.muli %arg0, %c1_i32 : i32
    %1 = arith.addi %0, %arg1 : i32
    %c0_i32 = arith.constant 0 : i32
    %2 = arith.minsi %1, %c0_i32 : i32
    %c0_i32_0 = arith.constant 0 : i32
    %c0_i32_1 = arith.constant 0 : i32
    return %2, %c0_i32_0 : i32, i32
  }
  func.func @transform_2(%arg0: i32, %arg1: i32) -> (i32, i32, i32) {
    %c0_i32 = arith.constant 0 : i32
    %c0_i32_0 = arith.constant 0 : i32
    %c0_i32_1 = arith.constant 0 : i32
    return %arg0, %c0_i32, %c0_i32_0 : i32, i32, i32
  }
  func.func @transform_3(%arg0: i32, %arg1: i32) -> (i32, i32, i32) {
    %c0_i32 = arith.constant 0 : i32
    %c0_i32_0 = arith.constant 0 : i32
    %c0_i32_1 = arith.constant 0 : i32
    return %arg0, %c0_i32, %c0_i32_0 : i32, i32, i32
  }
}

</mosaic_0001>

<llo_original>
// kernel: tpu_custom_call.1
$region0: #{tpu_custom_call.1}
  #allocation0 [shape = 'u32[]', space=smem, size = 0x4, offset = 0x4, fixed_abs, tag = 'smem constant byte address 0x4 - core index']
  #allocation1 [shape = 'u32[72,128]{1,0:T(1,128)}', space=vmem, size = 0x9000, scoped, tag = 'internal scratch']
  %s0 = inlined_call_operand.hbm [shape: f32[16,128], index: 0, kind: input, shape index: {}]
  %s1 = inlined_call_operand.hbm [shape: f32[16,128], index: 1, kind: input, shape index: {}]
  %s2 = inlined_call_operand.hbm [shape: f32[1,16,128], index: 2, kind: output, shape index: {0}]
  %s3 = inlined_call_operand.hbm [shape: f32[1,16,128], index: 3, kind: output, shape index: {1}]
  %4 = xla_tuple %s2, %s3
  %s5 = sld [smem:[#allocation0]]
  $region42: #{tpu_custom_call.1} parent=0
    _
  %s7 = ssub.s32 1, %s5
  %s8 = scalar_select 0, %s7, %s5
  $region1: #{tpu_custom_call.1} parent=0
    #allocation2 [shape = 'u8[8192]{0}', space=vmem, size = 0x2000, scoped, tag = 'input window, operand 0, single buffered']
    #allocation3 [shape = 's32[1]{0}', space=sflag, size = 0x4, scoped, tag = 'scoped memory for tpu_custom_call.1']
    #allocation4 [shape = 's32[1]{0}', space=sflag, size = 0x4, scoped, tag = 'scoped memory for tpu_custom_call.1']
    #allocation5 [shape = 'u8[8192]{0}', space=vmem, size = 0x2000, scoped, tag = 'input window, operand 1, single buffered']
    #allocation6 [shape = 's32[1]{0}', space=sflag, size = 0x4, scoped, tag = 'scoped memory for tpu_custom_call.1']
    #allocation7 [shape = 'u8[8192]{0}', space=vmem, size = 0x2000, scoped, tag = 'output window, operand 0, single buffered']
    #allocation8 [shape = 'u8[8192]{0}', space=vmem, size = 0x2000, scoped, tag = 'output window, operand 1, single buffered']
    #allocation9 [shape = 's32[1]{0}', space=sflag, size = 0x4, scoped, tag = 'scoped memory for tpu_custom_call.1']
    %9 = vsyncpa [#allocation3], 0
    %10 = vsyncpa [#allocation6], 0
    %11 = vsyncpa [#allocation4], 0
    %12 = vsyncpa [#allocation9], 0
    // Predicated region
    $region2: #{tpu_custom_call.1} parent=1 // pred_check
      _
    $region3: #{tpu_custom_call.1} parent=1 // pred_check_branch
      %14 = sbr.rel (0) target = $region5
    $region4: #{tpu_custom_call.1} parent=1 // pred_region
      %s15 = sadd.s32 0, 0
      %p16 = scmp.lt.s32.totalorder %s15, 0
      %s17 = scalar_select %p16, %s15, 0
      %s18 = smul.u32 2, %s17
      %20 = vsyncadd [#allocation3], 0
      %s21 = smul.addr %s18, 8
      %s22 = scalar_lea.hbm %s0, %s21
      %s23 = sshll.u32 %s22, 4
      %s24 = int_to_ptr.hbm [resolvable:$true] %s23
      %s25 = sshll.u32 [#allocation2], 4
      %s26 = int_to_ptr.vmem [resolvable:$true] %s25
      %31 = dma.hbm_to_vmem [thread:$0]  %s24, 256, %s26, [#allocation3], 128, 128, 8
    $region5: #{tpu_custom_call.1} parent=1 // pred_fallthru
      _
    // Predicated region
    $region6: #{tpu_custom_call.1} parent=1 // pred_check
      _
    $region7: #{tpu_custom_call.1} parent=1 // pred_check_branch
      %33 = sbr.rel (0) target = $region9
    $region8: #{tpu_custom_call.1} parent=1 // pred_region
      %s34 = sadd.s32 0, 0
      %p35 = scmp.lt.s32.totalorder %s34, 0
      %s36 = scalar_select %p35, %s34, 0
      %s37 = smul.u32 2, %s36
      %39 = vsyncadd [#allocation6], 0
      %s40 = smul.addr %s37, 8
      %s41 = scalar_lea.hbm %s1, %s40
      %s42 = sshll.u32 %s41, 4
      %s43 = int_to_ptr.hbm [resolvable:$true] %s42
      %s44 = sshll.u32 [#allocation5], 4
      %s45 = int_to_ptr.vmem [resolvable:$true] %s44
      %50 = dma.hbm_to_vmem [thread:$0]  %s43, 256, %s45, [#allocation6], 128, 128, 8
    $region9: #{tpu_custom_call.1} parent=1 // pred_fallthru
      _
    // Predicated region
    $region10: #{tpu_custom_call.1} parent=1 // pred_check
      _
    $region11: #{tpu_custom_call.1} parent=1 // pred_check_branch
      %52 = sbr.rel (0) target = $region13
    $region12: #{tpu_custom_call.1} parent=1 // pred_region
      %54 = dma.done [#allocation3], 256
    $region13: #{tpu_custom_call.1} parent=1 // pred_fallthru
      _
    // Predicated region
    $region14: #{tpu_custom_call.1} parent=1 // pred_check
      _
    $region15: #{tpu_custom_call.1} parent=1 // pred_check_branch
      %56 = sbr.rel (0) target = $region17
    $region16: #{tpu_custom_call.1} parent=1 // pred_region
      %58 = dma.done [#allocation6], 256
    $region17: #{tpu_custom_call.1} parent=1 // pred_fallthru
      _
    %s59 = sadd.s32 0, 0
    %p60 = scmp.lt.s32.totalorder %s59, 0
    %s61 = scalar_select %p60, %s59, 0
    %s62 = smul.u32 2, %s61
    %s63 = sadd.s32 0, 0
    %p64 = scmp.lt.s32.totalorder %s63, 0
    %s65 = scalar_select %p64, %s63, 0
    %s66 = smul.u32 2, %s65
    %s67 = sadd.s32 0, 0
    %p68 = scmp.eq.s32.totalorder 0, 0
    // Predicated region
    $region18: #{tpu_custom_call.1} parent=1 // pred_check
      %p69 = pneg %p68
    $region19: #{tpu_custom_call.1} parent=1 // pred_check_branch
      %71 = sbr.rel (%p69) target = $region21
    $region20: #{tpu_custom_call.1} parent=1 // pred_region
      %72 = vst [vmem:[#allocation7] sm:$0xff] 0.0
      %73 = vst [vmem:[#allocation7 + $0x8] sm:$0xff] 0.0
      %74 = vst [vmem:[#allocation8] sm:$0xff] 0.0
      %75 = vst [vmem:[#allocation8 + $0x8] sm:$0xff] 0.0
    $region21: #{tpu_custom_call.1} parent=1 // pred_fallthru
      _
    %p76 = scmp.lt.s32.totalorder %s67, 1
    // Predicated region
    $region22: #{tpu_custom_call.1} parent=1 // pred_check
      %p77 = pneg %p76
    $region23: #{tpu_custom_call.1} parent=1 // pred_check_branch
      %79 = sbr.rel (%p77) target = $region25
    $region24: #{tpu_custom_call.1} parent=1 // pred_region
      %v80 = vld [vmem:[#allocation2] sm:$0xff]
      %v81 = vld [vmem:[#allocation2 + $0x8] sm:$0xff]
      %v82 = vld [vmem:[#allocation5] sm:$0xff]
      %v83 = vld [vmem:[#allocation5 + $0x8] sm:$0xff]
      %vm84 = vcmp.ge.f32.partialorder %v82, 0.0
      %vm85 = vcmp.ge.f32.partialorder %v83, 0.0
      %vm86 = vcmp.ne.f32.partialorder %v82, 255.0
      %vm87 = vcmp.ne.f32.partialorder %v83, 255.0
      %vm88 = vmand %vm84, %vm86
      %vm89 = vmand %vm85, %vm87
      %v90 = vmul.f32 %v80, 0.5
      %v91 = vmul.f32 %v81, 0.5
      %v92 = vtanh.pop %v90
      %v93 = vtanh.pop %v91
      %v94 = vmul.f32 %v92, 0.5
      %v95 = vmul.f32 %v93, 0.5
      %v96 = vadd.f32 %v94, 0.5
      %v97 = vadd.f32 %v95, 0.5
      %v98 = vlog2.pop %v82
      %v99 = vmul.f32 %v98, 0.6931472
      %v100 = vlog2.pop %v83
      %v101 = vmul.f32 %v100, 0.6931472
      %v102 = vsub.f32 %v99, %v96
      %v103 = vsub.f32 %v101, %v97
      %v104 = vmul.f32 %v82, %v102
      %v105 = vmul.f32 %v83, %v103
      %v106 = vand.u32 2147483647, %v104
      %v107 = vand.u32 2147483647, %v105
      %vm108 = vcmp.ne.f32.partialorder %v82, 0.0
      %vm109 = vcmp.ne.f32.partialorder %v83, 0.0
      %vm110 = vmand %vm88, %vm108
      %vm111 = vmand %vm89, %vm109
      %v112 = vld [vmem:[#allocation7] sm:$0xff]
      %v113 = vld [vmem:[#allocation7 + $0x8] sm:$0xff]
      %v114 = vsel %vm110, %v106, 0.0
      %v115 = vsel %vm111, %v107, 0.0
      %v116 = vadd.f32 %v112, %v114
      %v117 = vadd.f32 %v113, %v115
      %118 = vst [vmem:[#allocation7] sm:$0xff] %v116
      %119 = vst [vmem:[#allocation7 + $0x8] sm:$0xff] %v117
      %v120 = vld [vmem:[#allocation8] sm:$0xff]
      %v121 = vld [vmem:[#allocation8 + $0x8] sm:$0xff]
      %v122 = vsel %vm88, 1.0, 0.0
      %v123 = vsel %vm89, 1.0, 0.0
      %v124 = vadd.f32 %v120, %v122
      %v125 = vadd.f32 %v121, %v123
      %126 = vst [vmem:[#allocation8] sm:$0xff] %v124
      %127 = vst [vmem:[#allocation8 + $0x8] sm:$0xff] %v125
    $region25: #{tpu_custom_call.1} parent=1 // pred_fallthru
      _
    // Predicated region
    $region26: #{tpu_custom_call.1} parent=1 // pred_check
      _
    $region27: #{tpu_custom_call.1} parent=1 // pred_check_branch
      %129 = sbr.rel (0) target = $region29
    $region28: #{tpu_custom_call.1} parent=1 // pred_region
      %131 = vsyncadd [#allocation4], 0
      %s132 = sshll.u32 [#allocation7], 4
      %s133 = int_to_ptr.vmem [resolvable:$true] %s132
      %s134 = sshll.u32 %s2, 4
      %s135 = int_to_ptr.hbm [resolvable:$true] %s134
      %140 = dma.vmem_to_hbm [thread:$0]  %s133, 256, %s135, [#allocation4], 128, 128, 8
    $region29: #{tpu_custom_call.1} parent=1 // pred_fallthru
      _
    // Predicated region
    $region30: #{tpu_custom_call.1} parent=1 // pred_check
      _
    $region31: #{tpu_custom_call.1} parent=1 // pred_check_branch
      %142 = sbr.rel (0) target = $region33
    $region32: #{tpu_custom_call.1} parent=1 // pred_region
      %144 = vsyncadd [#allocation9], 0
      %s145 = sshll.u32 [#allocation8], 4
      %s146 = int_to_ptr.vmem [resolvable:$true] %s145
      %s147 = sshll.u32 %s3, 4
      %s148 = int_to_ptr.hbm [resolvable:$true] %s147
      %153 = dma.vmem_to_hbm [thread:$0]  %s146, 256, %s148, [#allocation9], 128, 128, 8
    $region33: #{tpu_custom_call.1} parent=1 // pred_fallthru
      _
    // Predicated region
    $region34: #{tpu_custom_call.1} parent=1 // pred_check
      _
    $region35: #{tpu_custom_call.1} parent=1 // pred_check_branch
      %155 = sbr.rel (0) target = $region37
    $region36: #{tpu_custom_call.1} parent=1 // pred_region
      %157 = dma.done [#allocation4], 256
    $region37: #{tpu_custom_call.1} parent=1 // pred_fallthru
      _
    // Predicated region
    $region38: #{tpu_custom_call.1} parent=1 // pred_check
      _
    $region39: #{tpu_custom_call.1} parent=1 // pred_check_branch
      %159 = sbr.rel (0) target = $region41
    $region40: #{tpu_custom_call.1} parent=1 // pred_region
      %161 = dma.done [#allocation9], 256
    $region41: #{tpu_custom_call.1} parent=1 // pred_fallthru
      _
    %162 = vsyncpa [#allocation3], 1
    %163 = vsyncpa [#allocation6], 1
    %164 = vsyncpa [#allocation4], 1
    %165 = vsyncpa [#allocation9], 1

</llo_original>
